<compile_context>
chip_gen: v6e
topology: v6e:2x2x1
jax: 0.10.0
libtpu: 0.0.40
codegen_flags: <defaults>
</compile_context>

<pallas_src>
import functools

import numpy as np

import jax
import jax.numpy as jnp
from jax import lax
from jax.experimental import pallas as pl
from jax.experimental.pallas import tpu as pltpu


# ---------------------------------------------------------------------------
# Helpers
# ---------------------------------------------------------------------------

def _round_up(v, m):
    return ((v + m - 1) // m) * m


def _mosaic_params(dims=None):
    # 32 MiB is ample for every tile used here and is safe on v7x (64 MiB
    # physical VMEM) as well as v5e / v6e (128 MiB).
    kw = dict(vmem_limit_bytes=32 * 1024 * 1024)
    if dims is not None:
        kw["dimension_semantics"] = dims
    return pltpu.CompilerParams(**kw)


def _pick_tile_n(P, cap=2048):
    """Lane-dense output tile (multiple of 128) that divides the padded P."""
    Pr = _round_up(P, 128)
    if Pr <= cap:
        return Pr
    for t in (2048, 1024, 512, 256, 128):
        if t <= cap and Pr % t == 0:
            return t
    return 128


def _vmem_spec():
    return pl.BlockSpec(memory_space=pltpu.MemorySpace.VMEM)


# ---------------------------------------------------------------------------
# Pallas kernels (compute hot path)
# ---------------------------------------------------------------------------

def _gmm_kernel_single_k(a_ref, b_ref, o_ref, *, fuse_relu):
    """One (1, M, tn) output tile; whole contraction in a single step
    (no accumulator scratch, no init/finalize passes)."""
    b = b_ref[0]                                  # (K_pad, tn) bf16
    if fuse_relu:                                 # fused ReLU (exact on bf16)
        b = jnp.maximum(b, 0)
    o_ref[0] = jnp.dot(a_ref[0], b,
                       preferred_element_type=jnp.float32).astype(o_ref.dtype)


def _gmm_kernel_acc(a_ref, b_ref, o_ref, acc_ref, *, fuse_relu):
    """K-tiled variant (only used if the contraction exceeds one step)."""
    @pl.when(pl.program_id(2) == 0)
    def _():
        acc_ref[...] = jnp.zeros_like(acc_ref)

    b = b_ref[0]
    if fuse_relu:
        b = jnp.maximum(b, 0)
    acc_ref[...] += jnp.dot(a_ref[0], b, preferred_element_type=jnp.float32)

    @pl.when(pl.program_id(2) == pl.num_programs(2) - 1)
    def _():
        o_ref[0] = acc_ref[...].astype(o_ref.dtype)


@functools.partial(jax.jit, static_argnames=("fuse_relu",))
def pallas_grouped_matmul(a_stack, b, *, fuse_relu=False):
    """(G, M_pad, K_pad) bf16 weights @ (G, K, P) activations -> (G, M_pad, P_pad) f32.

    All G matmuls run from a single pallas_call (leading "parallel" grid axis),
    the activation matrix is streamed as bf16, and the single-K fast path is
    used whenever the contraction fits one step (always, in this network).
    """
    G, M_pad, K_pad = a_stack.shape
    Gb, K, P = b.shape
    assert Gb == G
    b = b.astype(jnp.bfloat16)                    # halve the streamed bytes
    if K_pad != K:
        b = jnp.pad(b, ((0, 0), (0, K_pad - K), (0, 0)))
    tn = _pick_tile_n(P)
    P_pad = _round_up(P, tn)
    if P_pad != P:
        b = jnp.pad(b, ((0, 0), (0, 0), (0, P_pad - P)))
    n_p = P_pad // tn

    if K_pad <= 512:                              # fast path: single K step
        return pl.pallas_call(
            functools.partial(_gmm_kernel_single_k, fuse_relu=fuse_relu),
            out_shape=jax.ShapeDtypeStruct((G, M_pad, P_pad), jnp.float32),
            grid=(G, n_p),
            in_specs=[pl.BlockSpec((1, M_pad, K_pad), lambda g, j: (g, 0, 0)),
                      pl.BlockSpec((1, K_pad, tn), lambda g, j: (g, 0, j))],
            out_specs=pl.BlockSpec((1, M_pad, tn), lambda g, j: (g, 0, j)),
            compiler_params=_mosaic_params(("parallel", "parallel")),
        )(a_stack, b)

    tk = 512
    assert K_pad % tk == 0
    return pl.pallas_call(
        functools.partial(_gmm_kernel_acc, fuse_relu=fuse_relu),
        out_shape=jax.ShapeDtypeStruct((G, M_pad, P_pad), jnp.float32),
        grid=(G, n_p, K_pad // tk),
        in_specs=[pl.BlockSpec((1, M_pad, tk), lambda g, j, k: (g, 0, k)),
                  pl.BlockSpec((1, tk, tn), lambda g, j, k: (g, k, j))],
        out_specs=pl.BlockSpec((1, M_pad, tn), lambda g, j, k: (g, 0, j)),
        scratch_shapes=[pltpu.VMEM((M_pad, tn), jnp.float32)],
        compiler_params=_mosaic_params(("parallel", "parallel", "arbitrary")),
    )(a_stack, b)


def _multi_dw_kernel(*refs, specs, out_hw, fuse_relu):
    """Fused depthwise convolutions (no HBM im2col).

    refs = (x_stack_ref, w_ref_0, ..., w_ref_{G-1}, o_ref).  The padded input
    stays resident in VMEM, ReLU is applied once per input, and every group
    performs its k*k shifted multiply-accumulates with static slices.
    """
    x_ref = refs[0]
    w_refs = refs[1:1 + len(specs)]
    o_ref = refs[-1]
    n_x, C, N, _, _ = x_ref.shape
    Ho, Wo = out_hw

    xs = []
    for xi in range(n_x):
        v = x_ref[xi]                             # (C, N, Hp, Wp) bf16
        if fuse_relu:
            v = jnp.maximum(v, 0)                 # exact on bf16
        xs.append(v.astype(jnp.float32))          # accumulate in f32

    for g, (k, dil, off_h, off_w, x_idx) in enumerate(specs):
        xg = xs[x_idx]
        w = w_refs[g]                             # (k*k, C, 1, 1, 1) f32
        acc = None
        for i in range(k):
            for j in range(k):
                hs = off_h + i * dil
                ws = off_w + j * dil
                win = lax.slice(xg, (0, 0, hs, ws), (C, N, hs + Ho, ws + Wo))
                wt = jnp.broadcast_to(w[i * k + j], (C, N, 1, 1))
                term = win * wt
                acc = term if acc is None else acc + term
        o_ref[g] = acc.astype(o_ref.dtype)


@functools.partial(jax.jit, static_argnames=("op_specs", "stride", "fuse_relu"))
def fused_depthwise(xs, weights, *, op_specs, stride, fuse_relu=True):
    """Run several depthwise convs in a single kernel.

    xs:       list of (C, N, H, W) inputs (length 1 => shared input).
    weights:  list of prepped (k*k, C, 1, 1, 1) f32 weights (one per group).
    op_specs: tuple of (k, dilation, padding, x_index) per group.
    Returns   (G, C, N, Ho, Wo) bf16 with the stride already applied.
    """
    C, N, H, W = xs[0].shape
    for (k, d, p, _) in op_specs:
        assert 2 * p == d * (k - 1), (k, d, p)    # 'same' sized at stride 1
    max_pad = max(p for (_, _, p, _) in op_specs)
    x_stack = jnp.stack(xs) if len(xs) > 1 else xs[0][None]
    x_stack = jnp.pad(x_stack, ((0, 0), (0, 0), (0, 0),
                                (max_pad, max_pad), (max_pad, max_pad)))
    x_stack = x_stack.astype(jnp.bfloat16)        # stream bf16, halve DMA
    G = len(op_specs)
    specs = tuple((k, d, max_pad - p, max_pad - p, xi)
                  for (k, d, p, xi) in op_specs)
    # TODO(synk): lane occupancy is limited by small W (<=16 of 128 lanes);
    # a space-to-lane reshuffle would fix it but is not worth it at these sizes.
    out = pl.pallas_call(
        functools.partial(_multi_dw_kernel, specs=specs, out_hw=(H, W),
                          fuse_relu=fuse_relu),
        out_shape=jax.ShapeDtypeStruct((G, C, N, H, W), jnp.bfloat16),
        in_specs=[_vmem_spec() for _ in range(1 + G)],
        out_specs=_vmem_spec(),
        compiler_params=_mosaic_params(),
    )(x_stack, *weights)
    if stride > 1:
        out = out[:, :, :, ::stride, ::stride]    # stride-1 'same' -> subsample
    return out


def _gap_linear_kernel(x_ref, w_ref, b_ref, o_ref):
    # x: (N, C, HW) f32, w: (C, n_classes) bf16, b: (1, n_classes) f32
    pooled = jnp.mean(x_ref[...], axis=-1)                       # GAP (f32)
    o_ref[...] = jnp.dot(pooled.astype(jnp.bfloat16), w_ref[...],
                         preferred_element_type=jnp.float32) + b_ref[...]


@jax.jit
def pallas_gap_linear(x, w_t, b):
    N, C, HW = x.shape
    n_classes = w_t.shape[1]
    return pl.pallas_call(
        _gap_linear_kernel,
        out_shape=jax.ShapeDtypeStruct((N, n_classes), jnp.float32),
        in_specs=[_vmem_spec() for _ in range(3)],
        out_specs=_vmem_spec(),
        compiler_params=_mosaic_params(),
    )(x, w_t, b)


# ---------------------------------------------------------------------------
# Weight prep (padding / casting / layout done once at construction)
# ---------------------------------------------------------------------------

def prep_matmul_weight(w4d):
    """(C_out, C_in, kh, kw) f32 -> zero-padded (M_pad, K_pad) bf16."""
    C_out = w4d.shape[0]
    K = w4d.shape[1] * w4d.shape[2] * w4d.shape[3]
    a = w4d.reshape(C_out, K)
    M_pad = _round_up(C_out, 8)
    K_pad = _round_up(K, 8) if K <= 512 else _round_up(K, 512)
    a = jnp.pad(a, ((0, M_pad - C_out), (0, K_pad - K)))
    return a.astype(jnp.bfloat16)


def prep_grouped_matmul_weight(w4d_list):
    """Stack conv weights (same contracting dim) into one (G, M_pad, K_pad)
    bf16 operand for the grouped matmul kernel."""
    c_outs = [int(w.shape[0]) for w in w4d_list]
    Ks = {int(w.shape[1] * w.shape[2] * w.shape[3]) for w in w4d_list}
    assert len(Ks) == 1
    K = Ks.pop()
    M_pad = _round_up(max(c_outs), 8)
    K_pad = _round_up(K, 8) if K <= 512 else _round_up(K, 512)
    mats = []
    for w, co in zip(w4d_list, c_outs):
        a = w.reshape(co, K)
        mats.append(jnp.pad(a, ((0, M_pad - co), (0, K_pad - K))))
    return jnp.stack(mats).astype(jnp.bfloat16), tuple(c_outs)


def prep_depthwise_weight(w4d):
    """(C, 1, kh, kw) f32 -> (kh*kw, C, 1, 1, 1) f32 (broadcast-ready)."""
    C, _, kh, kw = w4d.shape
    w = jnp.transpose(w4d.reshape(C, kh * kw))
    return w.reshape(kh * kw, C, 1, 1, 1).astype(jnp.float32)


# ---------------------------------------------------------------------------
# Dense convolution wrapper (channel-major layout: (C, N, H, W))
# ---------------------------------------------------------------------------

def _im2col_cm(x_cm, kh, kw, stride, padding, dilation):
    C, N, H, W = x_cm.shape
    Ho = (H + 2 * padding - dilation * (kh - 1) - 1) // stride + 1
    Wo = (W + 2 * padding - dilation * (kw - 1) - 1) // stride + 1
    xp = jnp.pad(x_cm, ((0, 0), (0, 0), (padding, padding), (padding, padding)))
    cols = []
    for i in range(kh):
        for j in range(kw):
            hi, wj = i * dilation, j * dilation
            cols.append(xp[:, :, hi:hi + stride * (Ho - 1) + 1:stride,
                               wj:wj + stride * (Wo - 1) + 1:stride])
    return jnp.stack(cols, axis=1), Ho, Wo          # (C, KK, N, Ho, Wo)


@functools.partial(jax.jit, static_argnames=(
    "c_out", "kh", "kw", "stride", "padding", "dilation", "fuse_relu"))
def conv2d_cm(x_cm, a_pad, *, c_out, kh, kw, stride, padding, dilation,
              fuse_relu):
    """Dense conv, channel-major: (C_in, N, H, W) -> (C_out, N, Ho, Wo)."""
    C_in, N, H, W = x_cm.shape
    if kh == 1 and kw == 1 and padding == 0 and dilation == 1:
        xs = x_cm[:, :, ::stride, ::stride] if stride > 1 else x_cm
        Ho, Wo = xs.shape[2], xs.shape[3]
        b = xs.reshape(C_in, N * Ho * Wo)           # no im2col for 1x1 convs
    else:
        # only the 3x3 stem takes this branch (runs once per forward)
        col, Ho, Wo = _im2col_cm(x_cm, kh, kw, stride, padding, dilation)
        b = col.reshape(C_in * kh * kw, N * Ho * Wo)
    out = pallas_grouped_matmul(a_pad[None], b[None], fuse_relu=fuse_relu)
    return out[0, :c_out, :N * Ho * Wo].reshape(c_out, N, Ho, Wo)


# ---------------------------------------------------------------------------
# JAX glue: BN (train-mode batch stats), pooling, channel shuffle
# ---------------------------------------------------------------------------

def batchnorm(x, gamma=None, beta=None, eps=1e-5):
    # Channel-major (C, N, H, W); freshly-built torch module => training-mode
    # BN (batch stats, biased variance).
    # TODO(synk): fold per-channel sum/sumsq into the matmul epilogue and apply
    # the normalization in the consumer kernel's prologue.
    mean = jnp.mean(x, axis=(1, 2, 3), keepdims=True)
    var = jnp.mean(jnp.square(x - mean), axis=(1, 2, 3), keepdims=True)
    y = (x - mean) * lax.rsqrt(var + eps)
    if gamma is not None:
        y = y * gamma + beta
    return y


def max_pool2d(x, k, stride, padding):
    pad = ((0, 0), (0, 0), (padding, padding), (padding, padding))
    return lax.reduce_window(x, jnp.array(-jnp.inf, x.dtype), lax.max,
                             (1, 1, k, k), (1, 1, stride, stride), pad)


_AVG_COUNT_CACHE = {}


def _avg_pool_counts(H, W, k, stride, padding):
    key = (H, W, k, stride, padding)
    if key not in _AVG_COUNT_CACHE:
        Ho = (H + 2 * padding - k) // stride + 1
        Wo = (W + 2 * padding - k) // stride + 1
        ones = np.pad(np.ones((H, W), np.float32),
                      ((padding, padding), (padding, padding)))
        cnt = np.zeros((Ho, Wo), np.float32)
        for i in range(k):
            for j in range(k):
                cnt += ones[i:i + stride * (Ho - 1) + 1:stride,
                            j:j + stride * (Wo - 1) + 1:stride]
        _AVG_COUNT_CACHE[key] = cnt.reshape(1, 1, Ho, Wo)
    return _AVG_COUNT_CACHE[key]


def avg_pool2d(x, k, stride, padding):
    # count_include_pad=False (DARTS convention); the divisor map is
    # precomputed on host and cached per shape.
    pad = ((0, 0), (0, 0), (padding, padding), (padding, padding))
    s = lax.reduce_window(x, jnp.array(0.0, x.dtype), lax.add,
                          (1, 1, k, k), (1, 1, stride, stride), pad)
    cnt = _avg_pool_counts(x.shape[2], x.shape[3], k, stride, padding)
    return s / jnp.asarray(cnt, x.dtype)


def channel_shuffle(x, groups):
    C, N, H, W = x.shape
    x = x.reshape(groups, C // groups, N, H, W)
    x = jnp.transpose(x, (1, 0, 2, 3, 4))
    return x.reshape(C, N, H, W)


def darts_weight_unpack(weight, n_nodes):
    w_dag, start = [], 0
    for i in range(n_nodes):
        w_dag.append(weight[start:start + 2 + i])
        start += 2 + i
    return w_dag


# ---------------------------------------------------------------------------
# Deterministic parameter generation
# ---------------------------------------------------------------------------

class ParamGen:
    def __init__(self, seed=0):
        self._key = jax.random.PRNGKey(seed)

    def normal(self, shape, scale=0.1):
        self._key, sub = jax.random.split(self._key)
        return scale * jax.random.normal(sub, shape, jnp.float32)


# ---------------------------------------------------------------------------
# DARTS building blocks (affine=False BN inside the search ops)
# ---------------------------------------------------------------------------

class StdConv:
    """ReLU -> Conv -> BN (ReLU fused into the matmul kernel)."""

    def __init__(self, pg, C_in, C_out, k, stride, padding, affine=False):
        self.a = prep_matmul_weight(pg.normal((C_out, C_in, k, k)))
        self.c_out, self.k = C_out, k
        self.stride, self.padding = stride, padding

    def __call__(self, x):
        y = conv2d_cm(x, self.a, c_out=self.c_out, kh=self.k, kw=self.k,
                      stride=self.stride, padding=self.padding, dilation=1,
                      fuse_relu=True)
        return batchnorm(y)


class FactorizedReduce:
    """ReLU -> two stride-2 1x1 convs (ONE grouped pallas_call) -> concat -> BN."""

    def __init__(self, pg, C_in, C_out, affine=False):
        c1 = C_out // 2
        c2 = C_out - c1
        self.a, _ = prep_grouped_matmul_weight(
            [pg.normal((c1, C_in, 1, 1)), pg.normal((c2, C_in, 1, 1))])
        self.c1, self.c2 = c1, c2

    def __call__(self, x):
        C_in, N, H, W = x.shape
        x1 = x[:, :, ::2, ::2]
        x2 = x[:, :, 1::2, 1::2]
        Ho, Wo = x1.shape[2], x1.shape[3]
        P = N * Ho * Wo
        b = jnp.stack([x1.reshape(C_in, P), x2.reshape(C_in, P)])
        out = pallas_grouped_matmul(self.a, b, fuse_relu=True)
        y1 = out[0, :self.c1, :P].reshape(self.c1, N, Ho, Wo)
        y2 = out[1, :self.c2, :P].reshape(self.c2, N, Ho, Wo)
        return batchnorm(jnp.concatenate([y1, y2], axis=0))


#  name            k  dil pad  is_sep
_CONV_PRIM = {
    'sep_conv_3x3': (3, 1, 1, True),
    'sep_conv_5x5': (5, 1, 2, True),
    'dil_conv_3x3': (3, 2, 2, False),
    'dil_conv_5x5': (5, 2, 4, False),
}


# ---------------------------------------------------------------------------
# PC-DARTS modules (channel-major activations)
# ---------------------------------------------------------------------------

class PcMixedOp:
    K = 4

    def __init__(self, pg, C_in, C_out, stride, basic_op_list):
        self.stride = stride
        self.n_ops = len(basic_op_list)
        C = C_in // self.K
        Co = C_out // self.K
        self.C, self.Co = C, Co

        self._pool = []            # (op_index, 'max'|'avg')
        self._skip = None          # op_index of skip_connect
        self._skip_fr = None
        self._conv_idx = []        # op_index per sep/dil candidate
        conv_specs = []
        dw1_w, pw1_w = [], []
        self._sep_pos = []         # positions (within conv list) that are sep
        dw2_w, pw2_w, dw2_specs = [], [], []

        for i, prim in enumerate(basic_op_list):
            if prim == 'max_pool_3x3':
                self._pool.append((i, 'max'))
            elif prim == 'avg_pool_3x3':
                self._pool.append((i, 'avg'))
            elif prim == 'skip_connect':
                self._skip = i
                if stride != 1:
                    self._skip_fr = FactorizedReduce(pg, C, Co)
            elif prim == 'none':
                pass               # weight * 0 == 0: skipped entirely
            elif prim in _CONV_PRIM:
                k, d, p, is_sep = _CONV_PRIM[prim]
                g = len(self._conv_idx)
                self._conv_idx.append(i)
                conv_specs.append((k, d, p, 0))
                dw1_w.append(prep_depthwise_weight(pg.normal((C, 1, k, k))))
                c_mid = C if is_sep else Co
                pw1_w.append(pg.normal((c_mid, C, 1, 1)))
                if is_sep:
                    dw2_specs.append((k, 1, p, len(self._sep_pos)))
                    self._sep_pos.append(g)
                    dw2_w.append(prep_depthwise_weight(pg.normal((c_mid, 1, k, k))))
                    pw2_w.append(pg.normal((Co, c_mid, 1, 1)))
            else:
                raise ValueError('unknown primitive: %r' % (prim,))

        self._conv_specs = tuple(conv_specs)
        self._dw1_w = dw1_w
        self._dw2_w = dw2_w
        self._dw2_specs = tuple(dw2_specs)
        if self._conv_idx:
            self._pw1_a, self._pw1_cout = prep_grouped_matmul_weight(pw1_w)
        if self._sep_pos:
            self._pw2_a, self._pw2_cout = prep_grouped_matmul_weight(pw2_w)

    def __call__(self, x, weights):
        C_all = x.shape[0]                         # channel-major: axis 0 is C
        split = C_all // self.K
        xtemp, xtemp2 = x[:split], x[split:]
        outs = {}

        if self._conv_idx:
            # Stage 1: every sep/dil candidate's ReLU + depthwise runs in ONE
            # fused VMEM-resident kernel (no HBM im2col), and every candidate's
            # 1x1 pointwise runs in ONE grouped bf16 MXU call.
            dw1 = fused_depthwise([xtemp], self._dw1_w,
                                  op_specs=self._conv_specs,
                                  stride=self.stride, fuse_relu=True)
            G1, Cc, Nn, Ho, Wo = dw1.shape
            P = Nn * Ho * Wo
            pw1 = pallas_grouped_matmul(self._pw1_a, dw1.reshape(G1, Cc, P))
            stage = []
            for g in range(G1):
                co = self._pw1_cout[g]
                stage.append(batchnorm(pw1[g, :co, :P].reshape(co, Nn, Ho, Wo)))
            if self._sep_pos:
                # SepConv second ReLU -> dw -> pw -> BN, again fused / grouped
                # across the sep candidates.
                xs2 = [stage[g] for g in self._sep_pos]
                dw2 = fused_depthwise(xs2, self._dw2_w,
                                      op_specs=self._dw2_specs,
                                      stride=1, fuse_relu=True)
                G2, C2 = dw2.shape[0], dw2.shape[1]
                pw2 = pallas_grouped_matmul(self._pw2_a, dw2.reshape(G2, C2, P))
                for t, g in enumerate(self._sep_pos):
                    co = self._pw2_cout[t]
                    stage[g] = batchnorm(
                        pw2[t, :co, :P].reshape(co, Nn, Ho, Wo))
            for g, i in enumerate(self._conv_idx):
                outs[i] = stage[g]

        for i, mode in self._pool:
            y = (max_pool2d(xtemp, 3, self.stride, 1) if mode == 'max'
                 else avg_pool2d(xtemp, 3, self.stride, 1))
            outs[i] = batchnorm(y)

        if self._skip is not None:
            outs[self._skip] = (xtemp if self.stride == 1
                                else self._skip_fr(xtemp))

        # softmax weights are strictly in (0, 1): every non-'none' op
        # contributes weights[i] * op(xtemp); 'none' contributes exactly 0.
        part_x = None
        for i in range(self.n_ops):
            if i not in outs:
                continue
            contrib = weights[i] * outs[i]
            part_x = contrib if part_x is None else part_x + contrib

        if part_x.shape[2] == x.shape[2]:
            ans = jnp.concatenate([part_x, xtemp2], axis=0)
        else:
            ans = jnp.concatenate([part_x, max_pool2d(xtemp2, 2, 2, 0)], axis=0)
        return channel_shuffle(ans, self.K)


class PcDartsCell:
    def __init__(self, pg, n_nodes, C_pp, C_p, C, reduction_p, reduction,
                 basic_op_list, multiplier):
        self.reduction = reduction
        self.n_nodes = n_nodes
        self._multiplier = multiplier
        if reduction_p:
            self.preproc0 = FactorizedReduce(pg, C_pp, C, False)
        else:
            self.preproc0 = StdConv(pg, C_pp, C, 1, 1, 0, False)
        self.preproc1 = StdConv(pg, C_p, C, 1, 1, 0, False)
        self.dag = []
        for i in range(n_nodes):
            row = []
            for j in range(2 + i):
                stride = 2 if reduction and j < 2 else 1
                row.append(PcMixedOp(pg, C, C, stride, basic_op_list))
            self.dag.append(row)

    def __call__(self, s0, s1, sample, sample2):
        s0 = self.preproc0(s0)
        s1 = self.preproc1(s1)
        states = [s0, s1]
        w_dag = darts_weight_unpack(sample, self.n_nodes)
        w_w_dag = darts_weight_unpack(sample2, self.n_nodes)
        for edges, w_list, w_w_list in zip(self.dag, w_dag, w_w_dag):
            s_cur = None
            for i, (s, w, ww) in enumerate(zip(states, w_list, w_w_list)):
                contrib = ww * edges[i](s, w)
                s_cur = contrib if s_cur is None else s_cur + contrib
            states.append(s_cur)
        return jnp.concatenate(states[-self._multiplier:], axis=0)


class PcDartsCNN:
    def __init__(self, pg, C=16, n_classes=10, n_layers=8, n_nodes=4,
                 basic_op_list=(), multiplier=4):
        stem_multiplier = 3
        self._multiplier = multiplier
        self.C_in = 3
        self.n_nodes = n_nodes
        self.n_layers = n_layers
        self.basic_op_list = list(basic_op_list) if len(basic_op_list) else [
            'max_pool_3x3', 'avg_pool_3x3', 'skip_connect', 'sep_conv_3x3',
            'sep_conv_5x5', 'dil_conv_3x3', 'dil_conv_5x5', 'none']
        C_cur = stem_multiplier * C
        self.stem_a = prep_matmul_weight(pg.normal((C_cur, self.C_in, 3, 3)))
        self.stem_c = C_cur
        self.stem_gamma = jnp.ones((C_cur, 1, 1, 1), jnp.float32)  # BN affine
        self.stem_beta = jnp.zeros((C_cur, 1, 1, 1), jnp.float32)
        C_pp, C_p, C_cur = C_cur, C_cur, C
        self.cells = []
        reduction_p = False
        for i in range(n_layers):
            if i in [n_layers // 3, 2 * n_layers // 3]:
                C_cur *= 2
                reduction = True
            else:
                reduction = False
            cell = PcDartsCell(pg, n_nodes, C_pp, C_p, C_cur, reduction_p,
                               reduction, self.basic_op_list, multiplier)
            reduction_p = reduction
            self.cells.append(cell)
            C_cur_out = C_cur * n_nodes
            C_pp, C_p = C_p, C_cur_out
        self.lin_w_t = jnp.transpose(
            pg.normal((n_classes, C_p))).astype(jnp.bfloat16)
        self.lin_b = jnp.zeros((1, n_classes), jnp.float32)
        self.num_edges = sum(range(2, n_nodes + 2))
        self.all_edges = 2 * self.num_edges

    def __call__(self, x, sample, sample2):
        # NCHW -> channel-major once at the model edge.
        x_cm = jnp.transpose(x, (1, 0, 2, 3))
        s = conv2d_cm(x_cm, self.stem_a, c_out=self.stem_c, kh=3, kw=3,
                      stride=1, padding=1, dilation=1, fuse_relu=False)
        s0 = s1 = batchnorm(s, self.stem_gamma, self.stem_beta)
        for cell in self.cells:
            if cell.reduction:
                alphas = sample[self.num_edges:]
                betas = sample2[self.num_edges:]
            else:
                alphas = sample[:self.num_edges]
                betas = sample2[:self.num_edges]
            weights = jax.nn.softmax(alphas, axis=-1)
            n, start = 3, 2
            weights2 = jax.nn.softmax(betas[0:2], axis=-1)
            for _ in range(self.n_nodes - 1):
                end = start + n
                tw2 = jax.nn.softmax(betas[start:end], axis=-1)
                start, n = end, n + 1
                weights2 = jnp.concatenate([weights2, tw2], axis=0)
            s0, s1 = s1, cell(s0, s1, weights, weights2)
        C_p, N, H, W = s1.shape
        feats = jnp.transpose(s1, (1, 0, 2, 3)).reshape(N, C_p, H * W)
        logits = pallas_gap_linear(feats, self.lin_w_t, self.lin_b)
        return logits
        # TODO(synk): wrap the whole forward in a single jax.jit (one XLA
        # program) once the per-call-site Mosaic compile budget allows; the
        # per-wrapper jits above keep kernel compiles shape-cached.


# ---------------------------------------------------------------------------

if __name__ == "__main__":
    key = jax.random.PRNGKey(0)
    kx, ka, kb = jax.random.split(key, 3)

    # Small config consistent with the module's channel bookkeeping
    # (s_out channels == C_cur * n_nodes requires multiplier == n_nodes).
    C, n_classes, n_layers, n_nodes, multiplier = 8, 10, 3, 2, 2

    pg = ParamGen(seed=0)
    net = PcDartsCNN(pg, C=C, n_classes=n_classes, n_layers=n_layers,
                     n_nodes=n_nodes, multiplier=multiplier)

    x = jax.random.normal(kx, (2, 3, 16, 16), jnp.float32)
    n_ops = len(net.basic_op_list)
    sample = jax.random.normal(ka, (net.all_edges, n_ops), jnp.float32)   # alphas
    sample2 = jax.random.normal(kb, (net.all_edges,), jnp.float32)        # betas

    logits = net(x, sample, sample2)
    logits = jax.block_until_ready(logits)
    assert logits.shape == (2, n_classes)
    assert bool(jnp.all(jnp.isfinite(logits)))
    print("KERNEL_OK")
</pallas_src>

<mosaic_0001>
module attributes {stable_mosaic.version = 11 : i64} {
  func.func @_gmm_kernel_single_k(%arg0: i32, %arg1: i32, %arg2: memref<1x24x32xbf16, #tpu.memory_space<vmem>>, %arg3: memref<1x32x512xbf16, #tpu.memory_space<vmem>>, %arg4: memref<1x24x512xf32, #tpu.memory_space<vmem>>) attributes {dimension_semantics = [#tpu.dimension_semantics<parallel>, #tpu.dimension_semantics<parallel>], iteration_bounds = array<i64: 1, 1>, scalar_prefetch = 0 : i64, scratch_operands = 0 : i64, tpu.core_type = #tpu.core_type<tc>, window_params = [{transform_indices = @transform_0, window_bounds = array<i64: 1, 24, 32>}, {transform_indices = @transform_1, window_bounds = array<i64: 1, 32, 512>}, {transform_indices = @transform_2, window_bounds = array<i64: 1, 24, 512>}]} {
    %c0 = arith.constant 0 : index
    %c0_0 = arith.constant 0 : index
    %c0_1 = arith.constant 0 : index
    %0 = vector.load %arg3[%c0, %c0_0, %c0_1] : memref<1x32x512xbf16, #tpu.memory_space<vmem>>, vector<1x32x512xbf16>
    %1 = vector.shape_cast %0 : vector<1x32x512xbf16> to vector<32x512xbf16>
    %c0_2 = arith.constant 0 : index
    %c0_3 = arith.constant 0 : index
    %c0_4 = arith.constant 0 : index
    %2 = vector.load %arg2[%c0_2, %c0_3, %c0_4] : memref<1x24x32xbf16, #tpu.memory_space<vmem>>, vector<1x24x32xbf16>
    %3 = vector.shape_cast %2 : vector<1x24x32xbf16> to vector<24x32xbf16>
    %cst = arith.constant dense<0.000000e+00> : vector<24x512xf32>
    %4 = tpu.matmul %3, %1, %cst {dimension_numbers = #tpu.dot_dimension_numbers<[1], [0], [0], [1], [0, 0, 1, 1], [], []>} : vector<24x32xbf16>, vector<32x512xbf16>, vector<24x512xf32> -> vector<24x512xf32>
    %c0_5 = arith.constant 0 : index
    %c0_6 = arith.constant 0 : index
    %c0_7 = arith.constant 0 : index
    %5 = vector.load %arg4[%c0_5, %c0_6, %c0_7] : memref<1x24x512xf32, #tpu.memory_space<vmem>>, vector<1x24x512xf32>
    %6 = vector.shape_cast %5 : vector<1x24x512xf32> to vector<24x512xf32>
    %7 = vector.shape_cast %4 : vector<24x512xf32> to vector<1x24x512xf32>
    tpu.vector_store %arg4[%c0_5, %c0_6, %c0_7], %7 {strides = array<i32>} : memref<1x24x512xf32, #tpu.memory_space<vmem>>, vector<1x24x512xf32>,
    return
  }
  func.func @transform_0(%arg0: i32, %arg1: i32) -> (i32, i32, i32) {
    %c0_i32 = arith.constant 0 : i32
    %c0_i32_0 = arith.constant 0 : i32
    %c0_i32_1 = arith.constant 0 : i32
    return %arg0, %c0_i32, %c0_i32_0 : i32, i32, i32
  }
  func.func @transform_1(%arg0: i32, %arg1: i32) -> (i32, i32, i32) {
    %c0_i32 = arith.constant 0 : i32
    %c0_i32_0 = arith.constant 0 : i32
    return %arg0, %c0_i32, %arg1 : i32, i32, i32
  }
  func.func @transform_2(%arg0: i32, %arg1: i32) -> (i32, i32, i32) {
    %c0_i32 = arith.constant 0 : i32
    %c0_i32_0 = arith.constant 0 : i32
    return %arg0, %c0_i32, %arg1 : i32, i32, i32
  }
}

</mosaic_0001>

<llo_original>
// kernel: pallas_grouped_matmul.1
$region0: #{pallas_grouped_matmul.1}
  #allocation0 [shape = 'u32[]', space=smem, size = 0x4, offset = 0x4, fixed_abs, tag = 'smem constant byte address 0x4 - core index']
  #allocation1 [shape = 'u32[144,128]{1,0:T(1,128)}', space=vmem, size = 0x12000, scoped, tag = 'internal scratch']
  %s0 = inlined_call_operand.vmem [shape: bf16[1,24,32], index: 0, kind: input, shape index: {}]
  %s1 = inlined_call_operand.vmem [shape: bf16[1,32,512], index: 1, kind: input, shape index: {}]
  %s2 = inlined_call_operand.hbm [shape: f32[1,24,512], index: 2, kind: output, shape index: {}]
  %s3 = sld [smem:[#allocation0]]
  $region18: #{pallas_grouped_matmul.1} parent=0
    _
  %s5 = ssub.s32 1, %s3
  %s6 = scalar_select 0, %s5, %s3
  $region1: #{pallas_grouped_matmul.1} parent=0
    #allocation2 [shape = 'u8[49152]{0}', space=vmem, size = 0xc000, scoped, tag = 'output window, operand 0, single buffered']
    #allocation3 [shape = 's32[1]{0}', space=sflag, size = 0x4, scoped, tag = 'scoped memory for pallas_grouped_matmul.1']
    %7 = vsyncpa [#allocation3], 0
    // Predicated region
    $region2: #{pallas_grouped_matmul.1} parent=1 // pred_check
      _
    $region3: #{pallas_grouped_matmul.1} parent=1 // pred_check_branch
      %9 = sbr.rel (0) target = $region5
    $region4: #{pallas_grouped_matmul.1} parent=1 // pred_region
      _
    $region5: #{pallas_grouped_matmul.1} parent=1 // pred_fallthru
      _
    // Predicated region
    $region6: #{pallas_grouped_matmul.1} parent=1 // pred_check
      _
    $region7: #{pallas_grouped_matmul.1} parent=1 // pred_check_branch
      %11 = sbr.rel (0) target = $region9
    $region8: #{pallas_grouped_matmul.1} parent=1 // pred_region
      _
    $region9: #{pallas_grouped_matmul.1} parent=1 // pred_fallthru
      _
    %v13 = vld [vmem:[%s1] sm:$0xff]
    %v14 = vld [vmem:[%s1 + $0x8] sm:$0xff]
    %v15 = vld [vmem:[%s1 + $0x10] sm:$0xff]
    %v16 = vld [vmem:[%s1 + $0x18] sm:$0xff]
    %v17 = vld [vmem:[%s1 + $0x20] sm:$0xff]
    %v18 = vld [vmem:[%s1 + $0x28] sm:$0xff]
    %v19 = vld [vmem:[%s1 + $0x30] sm:$0xff]
    %v20 = vld [vmem:[%s1 + $0x38] sm:$0xff]
    %v21 = vld [vmem:[%s0] sm:$0xf]
    %v22 = vld [vmem:[%s0 + $0x4] sm:$0xf]
    %v23 = vld [vmem:[%s0 + $0x8] sm:$0xf]
    %v27 = vunpack.c.l.b16 %v21
    %v28 = vunpack.c.l.b16 %v22
    %v29 = vunpack.c.l.b16 %v23
    %v30 = vpack.c.b16 %v28, %v27
    %v31 = vpack.c.b16 %v29, %v29
    %v40 = vunpack.c.l.b16 %v13
    %v41 = vunpack.c.h.b16 %v13
    %v42 = vunpack.c.l.b16 %v14
    %v43 = vunpack.c.h.b16 %v14
    %v44 = vunpack.c.l.b16 %v15
    %v45 = vunpack.c.h.b16 %v15
    %v46 = vunpack.c.l.b16 %v16
    %v47 = vunpack.c.h.b16 %v16
    %v48 = vunpack.c.l.b16 %v17
    %v49 = vunpack.c.h.b16 %v17
    %v50 = vunpack.c.l.b16 %v18
    %v51 = vunpack.c.h.b16 %v18
    %v52 = vunpack.c.l.b16 %v19
    %v53 = vunpack.c.h.b16 %v19
    %v54 = vunpack.c.l.b16 %v20
    %v55 = vunpack.c.h.b16 %v20
    %v56 = vpack.c.b16 %v44, %v40
    %v57 = vpack.c.b16 %v45, %v41
    %v58 = vpack.c.b16 %v46, %v42
    %v59 = vpack.c.b16 %v47, %v43
    %v60 = vpack.c.b16 %v52, %v48
    %v61 = vpack.c.b16 %v53, %v49
    %v62 = vpack.c.b16 %v54, %v50
    %v63 = vpack.c.b16 %v55, %v51
    %vm72 = vcmask 261120
    %v74 = vsel %vm72, %v30, 0
    %v77 = vsel %vm72, %v31, 0
    %79 = vmatprep.subr.bf16.mxu0 0
    %80 = vmatpush1.bf16.msra.mxu0 0
    %81 = vmatprep.subr.bf16.mxu0 0
    %82 = vmatpush1.bf16.msra.mxu0 0
    %83 = vmatprep.subr.bf16.mxu0 0
    %84 = vmatpush1.bf16.msra.mxu0 0
    %85 = vmatprep.subr.bf16.mxu0 0
    %86 = vmatpush1.bf16.msra.mxu0 0
    %87 = vmatprep.subr.bf16.mxu0 0
    %88 = vmatpush1.bf16.msra.mxu0 0
    %89 = vmatprep.subr.bf16.mxu0 0
    %90 = vmatpush1.bf16.msra.mxu0 0
    %91 = vmatprep.subr.bf16.mxu0 %v61
    %92 = vmatpush1.bf16.msra.mxu0 %v60
    %93 = vmatprep.subr.bf16.mxu0 %v57
    %94 = vmatpush1.bf16.msra.mxu0 %v56
    %95 = vmatprep.subr.bf16.mxu0 0
    %96 = vmatpush2.bf16.msra.mxu0 0
    %97 = vmatprep.subr.bf16.mxu0 0
    %98 = vmatpush2.bf16.msra.mxu0 0
    %99 = vmatprep.subr.bf16.mxu0 0
    %100 = vmatpush2.bf16.msra.mxu0 0
    %101 = vmatprep.subr.bf16.mxu0 0
    %102 = vmatpush2.bf16.msra.mxu0 0
    %103 = vmatprep.subr.bf16.mxu0 0
    %104 = vmatpush2.bf16.msra.mxu0 0
    %105 = vmatprep.subr.bf16.mxu0 0
    %106 = vmatpush2.bf16.msra.mxu0 0
    %107 = vmatprep.subr.bf16.mxu0 0
    %108 = vmatpush2.bf16.msra.mxu0 0
    %109 = vmatprep.subr.bf16.mxu0 0
    %110 = vmatpush2.bf16.msra.mxu0 0
    %111 = vmatprep.mubr.bf16.mxu0 0
    %112 = vmatmul.mubr.bf16.gmra.mxu0 %v74
    %v113 = vpop.f32.mrf.mxu0
    %v114 = vadd.f32 0.0, %v113
    %v115 = vpop.f32.mrf.mxu0
    %v116 = vadd.f32 0.0, %v115
    %v117 = vpop.f32.mrf.mxu0
    %v118 = vadd.f32 0.0, %v117
    %v119 = vpop.f32.mrf.mxu0
    %v120 = vadd.f32 0.0, %v119
    %121 = vmatprep.mubr.bf16.mxu0 0
    %122 = vmatmul.mubr.bf16.gmra.mxu0 %v77
    %v123 = vpop.f32.mrf.mxu0
    %v124 = vadd.f32 0.0, %v123
    %v125 = vpop.f32.mrf.mxu0
    %v126 = vadd.f32 0.0, %v125
    %v127 = vpop.f32.mrf.mxu0
    %v128 = vpop.f32.mrf.mxu0
    %129 = vdwg.mxu0
    %130 = vmatprep.subr.bf16.mxu0 0
    %131 = vmatpush1.bf16.msra.mxu0 0
    %132 = vmatprep.subr.bf16.mxu0 0
    %133 = vmatpush1.bf16.msra.mxu0 0
    %134 = vmatprep.subr.bf16.mxu0 0
    %135 = vmatpush1.bf16.msra.mxu0 0
    %136 = vmatprep.subr.bf16.mxu0 0
    %137 = vmatpush1.bf16.msra.mxu0 0
    %138 = vmatprep.subr.bf16.mxu0 0
    %139 = vmatpush1.bf16.msra.mxu0 0
    %140 = vmatprep.subr.bf16.mxu0 0
    %141 = vmatpush1.bf16.msra.mxu0 0
    %142 = vmatprep.subr.bf16.mxu0 %v63
    %143 = vmatpush1.bf16.msra.mxu0 %v62
    %144 = vmatprep.subr.bf16.mxu0 %v59
    %145 = vmatpush1.bf16.msra.mxu0 %v58
    %146 = vmatprep.subr.bf16.mxu0 0
    %147 = vmatpush2.bf16.msra.mxu0 0
    %148 = vmatprep.subr.bf16.mxu0 0
    %149 = vmatpush2.bf16.msra.mxu0 0
    %150 = vmatprep.subr.bf16.mxu0 0
    %151 = vmatpush2.bf16.msra.mxu0 0
    %152 = vmatprep.subr.bf16.mxu0 0
    %153 = vmatpush2.bf16.msra.mxu0 0
    %154 = vmatprep.subr.bf16.mxu0 0
    %155 = vmatpush2.bf16.msra.mxu0 0
    %156 = vmatprep.subr.bf16.mxu0 0
    %157 = vmatpush2.bf16.msra.mxu0 0
    %158 = vmatprep.subr.bf16.mxu0 0
    %159 = vmatpush2.bf16.msra.mxu0 0
    %160 = vmatprep.subr.bf16.mxu0 0
    %161 = vmatpush2.bf16.msra.mxu0 0
    %162 = vmatprep.mubr.bf16.mxu0 0
    %163 = vmatmul.mubr.bf16.gmra.mxu0 %v74
    %v164 = vpop.f32.mrf.mxu0
    %v165 = vadd.f32 0.0, %v164
    %v166 = vpop.f32.mrf.mxu0
    %v167 = vadd.f32 0.0, %v166
    %v168 = vpop.f32.mrf.mxu0
    %v169 = vadd.f32 0.0, %v168
    %v170 = vpop.f32.mrf.mxu0
    %v171 = vadd.f32 0.0, %v170
    %172 = vmatprep.mubr.bf16.mxu0 0
    %173 = vmatmul.mubr.bf16.gmra.mxu0 %v77
    %v174 = vpop.f32.mrf.mxu0
    %v175 = vadd.f32 0.0, %v174
    %v176 = vpop.f32.mrf.mxu0
    %v177 = vadd.f32 0.0, %v176
    %v178 = vpop.f32.mrf.mxu0
    %v179 = vpop.f32.mrf.mxu0
    %180 = vdwg.mxu0
    %181 = vst [vmem:[#allocation2] sm:$0xff] %v114
    %182 = vst [vmem:[#allocation2 + $0x8] sm:$0xff] %v116
    %183 = vst [vmem:[#allocation2 + $0x10] sm:$0xff] %v165
    %184 = vst [vmem:[#allocation2 + $0x18] sm:$0xff] %v167
    %185 = vst [vmem:[#allocation2 + $0x20] sm:$0xff] %v118
    %186 = vst [vmem:[#allocation2 + $0x28] sm:$0xff] %v120
    %187 = vst [vmem:[#allocation2 + $0x30] sm:$0xff] %v169
    %188 = vst [vmem:[#allocation2 + $0x38] sm:$0xff] %v171
    %189 = vst [vmem:[#allocation2 + $0x40] sm:$0xff] %v124
    %190 = vst [vmem:[#allocation2 + $0x48] sm:$0xff] %v126
    %191 = vst [vmem:[#allocation2 + $0x50] sm:$0xff] %v175
    %192 = vst [vmem:[#allocation2 + $0x58] sm:$0xff] %v177
    // Predicated region
    $region10: #{pallas_grouped_matmul.1} parent=1 // pred_check
      _
    $region11: #{pallas_grouped_matmul.1} parent=1 // pred_check_branch
      %194 = sbr.rel (0) target = $region13
    $region12: #{pallas_grouped_matmul.1} parent=1 // pred_region
      %s196 = ssub.s32 1536, 1536
      %197 = vsyncadd [#allocation3], %s196
      %s198 = sshll.u32 [#allocation2], 4
      %s199 = int_to_ptr.vmem [resolvable:$true] %s198
      %204 = dma.vmem_to_hbm [thread:$0]  %s199, 1536, %s2, [#allocation3], 512, 512, 32
    $region13: #{pallas_grouped_matmul.1} parent=1 // pred_fallthru
      _
    // Predicated region
    $region14: #{pallas_grouped_matmul.1} parent=1 // pred_check
      _
    $region15: #{pallas_grouped_matmul.1} parent=1 // pred_check_branch
      %206 = sbr.rel (0) target = $region17
    $region16: #{pallas_grouped_matmul.1} parent=1 // pred_region
      %207 = dma.done [#allocation3], 1536
    $region17: #{pallas_grouped_matmul.1} parent=1 // pred_fallthru
      _
    %208 = vsyncpa [#allocation3], 1

</llo_original>
